<compile_context>
chip_gen: v7x
topology: tpu7x:2x2x1
jax: 0.10.0
libtpu: 0.0.40
codegen_flags: <defaults>
</compile_context>

<pallas_src>
import functools

import jax
import jax.numpy as jnp
from jax.experimental import pallas as pl
from jax.experimental.pallas import tpu as pltpu

LANE = 128
SUBLANE = 8


def _round_up(n, m):
    return ((n + m - 1) // m) * m


def lstm_seq_kernel(xproj_ref, wh_ref, h0_ref, c0_ref,
                    hseq_ref, hlast_ref, clast_ref,
                    h_state, c_state):
    """One recurrence step at grid point (batch_block, t).

    xproj_ref : (1, BB, 4*Hp) f32  precomputed x_t @ W_x + b, gate order [f,i,o,g]
    wh_ref    : (Hp, 4*Hp)         recurrent weights (bf16/f32), VMEM-resident
    h0/c0     : (BB, Hp) f32       initial state (read only at t == 0)
    hseq_ref  : (1, BB, Hp) f32    per-step hidden output
    hlast/clast : (BB, Hp) f32     final state (written only at t == T-1)
    h_state/c_state : VMEM scratch (BB, Hp) f32, persistent across the T loop
    """
    t = pl.program_id(1)

    @pl.when(t == 0)
    def _():
        h_state[...] = h0_ref[...]
        c_state[...] = c0_ref[...]

    Hp = h_state.shape[-1]

    # Recurrent matmul only (K = Hp); the input projection was hoisted outside.
    gates = xproj_ref[0] + jnp.dot(
        h_state[...].astype(wh_ref.dtype), wh_ref[...],
        preferred_element_type=jnp.float32)

    # Gate slices are 128-lane aligned (Hp is a lane multiple) -> no relayouts.
    f = jax.nn.sigmoid(gates[:, 0 * Hp:1 * Hp])
    i = jax.nn.sigmoid(gates[:, 1 * Hp:2 * Hp])
    o = jax.nn.sigmoid(gates[:, 2 * Hp:3 * Hp])
    g = jnp.tanh(gates[:, 3 * Hp:4 * Hp])
    # TODO(synk): at large H the 5 transcendentals/element can saturate the single
    # EUP before the bf16 MXU does; check the bundle dump before more matmul tuning.

    new_c = f * c_state[...] + i * g
    new_h = o * jnp.tanh(new_c)

    c_state[...] = new_c
    h_state[...] = new_h
    hseq_ref[0] = new_h

    @pl.when(t == pl.num_programs(1) - 1)
    def _():
        hlast_ref[...] = new_h
        clast_ref[...] = new_c


def prepare_params(params, input_size, hidden_size, output_size,
                   param_dtype=jnp.bfloat16):
    """One-time weight prep (hoisted out of the step/sequence call path).

    Returns zero-padded, pre-stacked, pre-transposed weights (gate order [f,i,o,g]):
      Wx   : (Dp, 4*Hp)  input-projection weights (applied outside the recurrence)
      Wh   : (Hp, 4*Hp)  recurrent weights (VMEM-resident inside the kernel)
      b    : (1, 4*Hp)   f32 gate bias (folded into the precomputed projection)
      Wout : (Hp, Op), bout : (1, Op)  output head (applied outside the recurrence)
    """
    Dp = _round_up(input_size, LANE)
    Hp = _round_up(hidden_size, LANE)
    Op = _round_up(output_size, LANE)

    def pad(w, rows, cols):
        return jnp.zeros((rows, cols), jnp.float32).at[:w.shape[0], :w.shape[1]].set(w)

    wx_blocks, wh_blocks, b_blocks = [], [], []
    for gname in ("f", "i", "o", "g"):
        wx_blocks.append(pad(params[f"W_xh_{gname}"].T, Dp, Hp))
        wh_blocks.append(pad(params[f"W_hh_{gname}"].T, Hp, Hp))
        b_blocks.append(jnp.zeros((Hp,), jnp.float32).at[:hidden_size].set(
            params[f"b_xh_{gname}"]))

    Wx = jnp.concatenate(wx_blocks, axis=1).astype(param_dtype)       # (Dp, 4Hp)
    Wh = jnp.concatenate(wh_blocks, axis=1).astype(param_dtype)       # (Hp, 4Hp)
    b = jnp.concatenate(b_blocks, axis=0)[None].astype(jnp.float32)   # (1, 4Hp)
    Wout = pad(params["W_out"].T, Hp, Op).astype(param_dtype)         # (Hp, Op)
    bout = jnp.zeros((1, Op), jnp.float32).at[0, :output_size].set(params["b_out"])
    return {"Wx": Wx, "Wh": Wh, "b": b, "Wout": Wout, "bout": bout}


@functools.partial(jax.jit, static_argnames=("output_size",))
def lstm_sequence(xs, h0, c0, prepared, *, output_size):
    """Run T LSTM cell steps in one fused kernel.

    xs: (T, B, D_in).  Returns (h_seq (T,B,H), h_last (B,H), c_last (B,H),
    out_seq (T,B,O)); each step is exactly the PyTorch module's forward.
    """
    T, B, D_in = xs.shape
    H = h0.shape[-1]

    Wx, Wh, b = prepared["Wx"], prepared["Wh"], prepared["b"]
    Wout, bout = prepared["Wout"], prepared["bout"]
    Dp, Hp, Op = Wx.shape[0], Wh.shape[0], Wout.shape[1]
    Bp = _round_up(max(B, SUBLANE), SUBLANE)
    BB = Bp              # one batch block here; larger batches could split (parallel axis)
    n_bb = Bp // BB

    # Pad activations ONCE for the whole sequence (padded lanes stay exactly 0
    # through the recurrence since weights / bias / c are 0 there).
    x_p = jnp.zeros((T, Bp, Dp), jnp.float32).at[:, :B, :D_in].set(xs)
    h0_p = jnp.zeros((Bp, Hp), jnp.float32).at[:B, :H].set(h0)
    c0_p = jnp.zeros((Bp, Hp), jnp.float32).at[:B, :H].set(c0)

    # Input projection for the whole sequence: one big MXU-friendly matmul
    # (T*Bp rows) outside the serial recurrence, f32 accumulation.
    xproj = (jnp.dot(x_p.reshape(T * Bp, Dp).astype(Wx.dtype), Wx,
                     preferred_element_type=jnp.float32)
             .reshape(T, Bp, 4 * Hp) + b)

    # Advisory cost + VMEM budget (v7x only has 64 MiB physical VMEM; bf16 weights
    # keep the resident Wh small).
    flops = 2 * T * Bp * Hp * 4 * Hp
    transcendentals = 5 * T * Bp * Hp
    bytes_accessed = (xproj.size * 4 + Wh.size * Wh.dtype.itemsize
                      + (h0_p.size + c0_p.size) * 4
                      + (T * Bp * Hp + 2 * Bp * Hp) * 4)
    vmem_est = (Wh.size * Wh.dtype.itemsize            # resident recurrent weights
                + 2 * (BB * 4 * Hp + 3 * BB * Hp) * 4  # double-buffered in/out blocks
                + 2 * BB * Hp * 4                      # h/c state scratch
                + 4 * BB * Hp * 4)                     # final-state blocks
    vmem_limit = int(min(64 * 2 ** 20, max(32 * 2 ** 20, 4 * vmem_est)))

    hseq_p, hlast_p, clast_p = pl.pallas_call(
        lstm_seq_kernel,
        out_shape=(
            jax.ShapeDtypeStruct((T, Bp, Hp), jnp.float32),
            jax.ShapeDtypeStruct((Bp, Hp), jnp.float32),
            jax.ShapeDtypeStruct((Bp, Hp), jnp.float32),
        ),
        grid_spec=pltpu.PrefetchScalarGridSpec(
            num_scalar_prefetch=0,
            grid=(n_bb, T),
            in_specs=[
                pl.BlockSpec((1, BB, 4 * Hp), lambda bb, t: (t, bb, 0)),
                pl.BlockSpec((Hp, 4 * Hp), lambda bb, t: (0, 0)),   # VMEM-resident
                pl.BlockSpec((BB, Hp), lambda bb, t: (bb, 0)),
                pl.BlockSpec((BB, Hp), lambda bb, t: (bb, 0)),
            ],
            out_specs=(
                pl.BlockSpec((1, BB, Hp), lambda bb, t: (t, bb, 0)),
                pl.BlockSpec((BB, Hp), lambda bb, t: (bb, 0)),
                pl.BlockSpec((BB, Hp), lambda bb, t: (bb, 0)),
            ),
            scratch_shapes=[pltpu.VMEM((BB, Hp), jnp.float32),
                            pltpu.VMEM((BB, Hp), jnp.float32)],
        ),
        input_output_aliases={2: 1, 3: 2},   # h0 -> h_last, c0 -> c_last
        compiler_params=pltpu.CompilerParams(
            dimension_semantics=("parallel", "arbitrary"),
            vmem_limit_bytes=vmem_limit),
        cost_estimate=pl.CostEstimate(flops=flops,
                                      transcendentals=transcendentals,
                                      bytes_accessed=bytes_accessed),
    )(xproj, Wh, h0_p, c0_p)

    # Output head for ALL steps as one batched matmul outside the recurrence.
    out_p = (jnp.dot(hseq_p.reshape(T * Bp, Hp).astype(Wout.dtype), Wout,
                     preferred_element_type=jnp.float32)
             .reshape(T, Bp, Op) + bout)

    return (hseq_p[:, :B, :H], hlast_p[:B, :H], clast_p[:B, :H],
            out_p[:, :B, :output_size])


def lstm_cell(x, h, c, prepared, *, output_size):
    """One LSTM cell step == the PyTorch module's forward.
    Returns (new_hidden, new_cell, output)."""
    _, h_last, c_last, out_seq = lstm_sequence(
        x[None], h, c, prepared, output_size=output_size)
    return h_last, c_last, out_seq[0]


def init_params(key, input_size, hidden_size, output_size):
    """Deterministic parameter init mirroring the PyTorch module's shapes."""
    ks = jax.random.split(key, 10)

    def lin(k, out_f, in_f):
        bound = 1.0 / jnp.sqrt(in_f)
        return jax.random.uniform(k, (out_f, in_f), jnp.float32, -bound, bound)

    def bias(k, out_f, in_f):
        bound = 1.0 / jnp.sqrt(in_f)
        return jax.random.uniform(k, (out_f,), jnp.float32, -bound, bound)

    return {
        "W_xh_f": lin(ks[0], hidden_size, input_size),
        "b_xh_f": bias(ks[0], hidden_size, input_size),
        "W_hh_f": lin(ks[1], hidden_size, hidden_size),
        "W_xh_i": lin(ks[2], hidden_size, input_size),
        "b_xh_i": bias(ks[2], hidden_size, input_size),
        "W_hh_i": lin(ks[3], hidden_size, hidden_size),
        "W_xh_o": lin(ks[4], hidden_size, input_size),
        "b_xh_o": bias(ks[4], hidden_size, input_size),
        "W_hh_o": lin(ks[5], hidden_size, hidden_size),
        "W_xh_g": lin(ks[6], hidden_size, input_size),
        "b_xh_g": bias(ks[6], hidden_size, input_size),
        "W_hh_g": lin(ks[7], hidden_size, hidden_size),
        "W_out":  lin(ks[8], output_size, hidden_size),
        "b_out":  bias(ks[9], output_size, hidden_size),
    }


def lstm_ref(x, h, c, p):
    """Plain-JAX reference matching the PyTorch forward exactly."""
    def linb(v, W, b): return v @ W.T + b
    def lin(v, W): return v @ W.T
    f = jax.nn.sigmoid(linb(x, p["W_xh_f"], p["b_xh_f"]) + lin(h, p["W_hh_f"]))
    i = jax.nn.sigmoid(linb(x, p["W_xh_i"], p["b_xh_i"]) + lin(h, p["W_hh_i"]))
    o = jax.nn.sigmoid(linb(x, p["W_xh_o"], p["b_xh_o"]) + lin(h, p["W_hh_o"]))
    g = jnp.tanh(linb(x, p["W_xh_g"], p["b_xh_g"]) + lin(h, p["W_hh_g"]))
    new_c = f * c + i * g
    new_h = o * jnp.tanh(new_c)
    out = linb(new_h, p["W_out"], p["b_out"])
    return new_h, new_c, out


def lstm_seq_ref(xs, h, c, p):
    hs, outs = [], []
    for t in range(xs.shape[0]):
        h, c, o = lstm_ref(xs[t], h, c, p)
        hs.append(h)
        outs.append(o)
    return jnp.stack(hs), h, c, jnp.stack(outs)


if __name__ == "__main__":
    input_size, hidden_size, output_size = 16, 32, 8
    batch, seq_len = 4, 8

    key = jax.random.PRNGKey(0)
    kx, kh, kc, kp = jax.random.split(key, 4)
    x_seq = jax.random.normal(kx, (seq_len, batch, input_size), jnp.float32)
    h0 = jax.random.normal(kh, (batch, hidden_size), jnp.float32)
    c0 = jax.random.normal(kc, (batch, hidden_size), jnp.float32)
    params = init_params(kp, input_size, hidden_size, output_size)

    # Pure-JAX references.
    rh, rc, ro = lstm_ref(x_seq[0], h0, c0, params)
    rhs, rhl, rcl, ros = lstm_seq_ref(x_seq, h0, c0, params)

    # ---- f32 parameter path: exact parity with the PyTorch-style reference ----
    prep_f32 = jax.block_until_ready(
        prepare_params(params, input_size, hidden_size, output_size,
                       param_dtype=jnp.float32))

    nh, nc, out = jax.block_until_ready(
        lstm_cell(x_seq[0], h0, c0, prep_f32, output_size=output_size))
    assert jnp.allclose(nh, rh, atol=1e-5, rtol=1e-4), jnp.abs(nh - rh).max()
    assert jnp.allclose(nc, rc, atol=1e-5, rtol=1e-4), jnp.abs(nc - rc).max()
    assert jnp.allclose(out, ro, atol=1e-5, rtol=1e-4), jnp.abs(out - ro).max()

    hs, hl, cl, os_ = jax.block_until_ready(
        lstm_sequence(x_seq, h0, c0, prep_f32, output_size=output_size))
    assert jnp.allclose(hs, rhs, atol=1e-5, rtol=1e-4), jnp.abs(hs - rhs).max()
    assert jnp.allclose(hl, rhl, atol=1e-5, rtol=1e-4), jnp.abs(hl - rhl).max()
    assert jnp.allclose(cl, rcl, atol=1e-5, rtol=1e-4), jnp.abs(cl - rcl).max()
    assert jnp.allclose(os_, ros, atol=1e-5, rtol=1e-4), jnp.abs(os_ - ros).max()

    # ---- bf16 weight path (default / perf): bf16-level tolerance ----
    prep_bf16 = jax.block_until_ready(
        prepare_params(params, input_size, hidden_size, output_size))
    hs2, hl2, cl2, os2 = jax.block_until_ready(
        lstm_sequence(x_seq, h0, c0, prep_bf16, output_size=output_size))
    assert jnp.allclose(hs2, rhs, atol=5e-2, rtol=5e-2), jnp.abs(hs2 - rhs).max()
    assert jnp.allclose(cl2, rcl, atol=5e-2, rtol=5e-2), jnp.abs(cl2 - rcl).max()
    assert jnp.allclose(os2, ros, atol=5e-2, rtol=5e-2), jnp.abs(os2 - ros).max()

    print("KERNEL_OK")
</pallas_src>

<mosaic_0001>
module attributes {stable_mosaic.version = 11 : i64} {
  func.func @lstm_seq_kernel(%arg0: i32, %arg1: i32, %arg2: memref<1x8x512xf32, #tpu.memory_space<vmem>>, %arg3: memref<128x512xf32, #tpu.memory_space<vmem>>, %arg4: memref<8x128xf32, #tpu.memory_space<vmem>>, %arg5: memref<8x128xf32, #tpu.memory_space<vmem>>, %arg6: memref<1x8x128xf32, #tpu.memory_space<vmem>>, %arg7: memref<8x128xf32, #tpu.memory_space<vmem>>, %arg8: memref<8x128xf32, #tpu.memory_space<vmem>>, %arg9: memref<8x128xf32, #tpu.memory_space<vmem>>, %arg10: memref<8x128xf32, #tpu.memory_space<vmem>>) attributes {dimension_semantics = [#tpu.dimension_semantics<parallel>, #tpu.dimension_semantics<arbitrary>], iteration_bounds = array<i64: 1, 1>, scalar_prefetch = 0 : i64, scratch_operands = 2 : i64, tpu.core_type = #tpu.core_type<tc>, window_params = [{transform_indices = @transform_0, window_bounds = array<i64: 1, 8, 512>}, {pipeline_mode = #tpu.pipeline_mode<synchronous>, transform_indices = @transform_1, window_bounds = array<i64: 128, 512>}, {transform_indices = @transform_2, window_bounds = array<i64: 8, 128>}, {transform_indices = @transform_3, window_bounds = array<i64: 8, 128>}, {transform_indices = @transform_4, window_bounds = array<i64: 1, 8, 128>}, {transform_indices = @transform_5, window_bounds = array<i64: 8, 128>}, {transform_indices = @transform_6, window_bounds = array<i64: 8, 128>}]} {
    %c0_i32 = arith.constant 0 : i32
    %0 = arith.cmpi eq, %arg1, %c0_i32 : i32
    %1 = arith.extui %0 : i1 to i32
    %c0_i32_0 = arith.constant 0 : i32
    %2 = arith.cmpi ne, %1, %c0_i32_0 : i32
    scf.if %2 {
      %c0_21 = arith.constant 0 : index
      %c0_22 = arith.constant 0 : index
      %43 = vector.load %arg4[%c0_21, %c0_22] : memref<8x128xf32, #tpu.memory_space<vmem>>, vector<8x128xf32>
      %c0_23 = arith.constant 0 : index
      %c0_24 = arith.constant 0 : index
      %44 = vector.load %arg9[%c0_23, %c0_24] : memref<8x128xf32, #tpu.memory_space<vmem>>, vector<8x128xf32>
      tpu.vector_store %arg9[%c0_23, %c0_24], %43 {strides = array<i32>} : memref<8x128xf32, #tpu.memory_space<vmem>>, vector<8x128xf32>,
      %c0_25 = arith.constant 0 : index
      %c0_26 = arith.constant 0 : index
      %45 = vector.load %arg5[%c0_25, %c0_26] : memref<8x128xf32, #tpu.memory_space<vmem>>, vector<8x128xf32>
      %c0_27 = arith.constant 0 : index
      %c0_28 = arith.constant 0 : index
      %46 = vector.load %arg10[%c0_27, %c0_28] : memref<8x128xf32, #tpu.memory_space<vmem>>, vector<8x128xf32>
      tpu.vector_store %arg10[%c0_27, %c0_28], %45 {strides = array<i32>} : memref<8x128xf32, #tpu.memory_space<vmem>>, vector<8x128xf32>,
    } else {
    }
    %c0 = arith.constant 0 : index
    %c0_1 = arith.constant 0 : index
    %c0_2 = arith.constant 0 : index
    %3 = vector.load %arg2[%c0, %c0_1, %c0_2] : memref<1x8x512xf32, #tpu.memory_space<vmem>>, vector<1x8x512xf32>
    %4 = vector.shape_cast %3 : vector<1x8x512xf32> to vector<8x512xf32>
    %c0_3 = arith.constant 0 : index
    %c0_4 = arith.constant 0 : index
    %5 = vector.load %arg9[%c0_3, %c0_4] : memref<8x128xf32, #tpu.memory_space<vmem>>, vector<8x128xf32>
    %c0_5 = arith.constant 0 : index
    %c0_6 = arith.constant 0 : index
    %6 = vector.load %arg3[%c0_5, %c0_6] : memref<128x512xf32, #tpu.memory_space<vmem>>, vector<128x512xf32>
    %cst = arith.constant dense<0.000000e+00> : vector<8x512xf32>
    %7 = tpu.matmul %5, %6, %cst {dimension_numbers = #tpu.dot_dimension_numbers<[1], [0], [0], [1], [0, 0, 1, 1], [], []>} : vector<8x128xf32>, vector<128x512xf32>, vector<8x512xf32> -> vector<8x512xf32>
    %8 = arith.addf %4, %7 : vector<8x512xf32>
    %9 = vector.extract_strided_slice %8 {offsets = [0, 0], sizes = [8, 128], strides = [1, 1]} : vector<8x512xf32> to vector<8x128xf32>
    %10 = arith.negf %9 : vector<8x128xf32>
    %11 = math.exp %10 : vector<8x128xf32>
    %cst_7 = arith.constant 1.000000e+00 : f32
    %12 = vector.broadcast %cst_7 : f32 to vector<8x128xf32>
    %13 = arith.addf %12, %11 : vector<8x128xf32>
    %14 = arith.divf %12, %13 : vector<8x128xf32>
    %15 = vector.extract_strided_slice %8 {offsets = [0, 128], sizes = [8, 128], strides = [1, 1]} : vector<8x512xf32> to vector<8x128xf32>
    %16 = arith.negf %15 : vector<8x128xf32>
    %17 = math.exp %16 : vector<8x128xf32>
    %cst_8 = arith.constant 1.000000e+00 : f32
    %18 = vector.broadcast %cst_8 : f32 to vector<8x128xf32>
    %19 = arith.addf %18, %17 : vector<8x128xf32>
    %20 = arith.divf %18, %19 : vector<8x128xf32>
    %21 = vector.extract_strided_slice %8 {offsets = [0, 256], sizes = [8, 128], strides = [1, 1]} : vector<8x512xf32> to vector<8x128xf32>
    %22 = arith.negf %21 : vector<8x128xf32>
    %23 = math.exp %22 : vector<8x128xf32>
    %cst_9 = arith.constant 1.000000e+00 : f32
    %24 = vector.broadcast %cst_9 : f32 to vector<8x128xf32>
    %25 = arith.addf %24, %23 : vector<8x128xf32>
    %26 = arith.divf %24, %25 : vector<8x128xf32>
    %27 = vector.extract_strided_slice %8 {offsets = [0, 384], sizes = [8, 128], strides = [1, 1]} : vector<8x512xf32> to vector<8x128xf32>
    %28 = math.tanh %27 : vector<8x128xf32>
    %c0_10 = arith.constant 0 : index
    %c0_11 = arith.constant 0 : index
    %29 = vector.load %arg10[%c0_10, %c0_11] : memref<8x128xf32, #tpu.memory_space<vmem>>, vector<8x128xf32>
    %30 = arith.mulf %14, %29 : vector<8x128xf32>
    %31 = arith.mulf %20, %28 : vector<8x128xf32>
    %32 = arith.addf %30, %31 : vector<8x128xf32>
    %33 = math.tanh %32 : vector<8x128xf32>
    %34 = arith.mulf %26, %33 : vector<8x128xf32>
    %c0_12 = arith.constant 0 : index
    %c0_13 = arith.constant 0 : index
    %35 = vector.load %arg10[%c0_12, %c0_13] : memref<8x128xf32, #tpu.memory_space<vmem>>, vector<8x128xf32>
    tpu.vector_store %arg10[%c0_12, %c0_13], %32 {strides = array<i32>} : memref<8x128xf32, #tpu.memory_space<vmem>>, vector<8x128xf32>,
    %c0_14 = arith.constant 0 : index
    %c0_15 = arith.constant 0 : index
    %36 = vector.load %arg9[%c0_14, %c0_15] : memref<8x128xf32, #tpu.memory_space<vmem>>, vector<8x128xf32>
    tpu.vector_store %arg9[%c0_14, %c0_15], %34 {strides = array<i32>} : memref<8x128xf32, #tpu.memory_space<vmem>>, vector<8x128xf32>,
    %c0_16 = arith.constant 0 : index
    %c0_17 = arith.constant 0 : index
    %c0_18 = arith.constant 0 : index
    %37 = vector.load %arg6[%c0_16, %c0_17, %c0_18] : memref<1x8x128xf32, #tpu.memory_space<vmem>>, vector<1x8x128xf32>
    %38 = vector.shape_cast %37 : vector<1x8x128xf32> to vector<8x128xf32>
    %39 = vector.shape_cast %34 : vector<8x128xf32> to vector<1x8x128xf32>
    tpu.vector_store %arg6[%c0_16, %c0_17, %c0_18], %39 {strides = array<i32>} : memref<1x8x128xf32, #tpu.memory_space<vmem>>, vector<1x8x128xf32>,
    %c0_i32_19 = arith.constant 0 : i32
    %40 = arith.cmpi eq, %arg1, %c0_i32_19 : i32
    %41 = arith.extui %40 : i1 to i32
    %c0_i32_20 = arith.constant 0 : i32
    %42 = arith.cmpi ne, %41, %c0_i32_20 : i32
    scf.if %42 {
      %c0_21 = arith.constant 0 : index
      %c0_22 = arith.constant 0 : index
      %43 = vector.load %arg7[%c0_21, %c0_22] : memref<8x128xf32, #tpu.memory_space<vmem>>, vector<8x128xf32>
      tpu.vector_store %arg7[%c0_21, %c0_22], %34 {strides = array<i32>} : memref<8x128xf32, #tpu.memory_space<vmem>>, vector<8x128xf32>,
      %c0_23 = arith.constant 0 : index
      %c0_24 = arith.constant 0 : index
      %44 = vector.load %arg8[%c0_23, %c0_24] : memref<8x128xf32, #tpu.memory_space<vmem>>, vector<8x128xf32>
      tpu.vector_store %arg8[%c0_23, %c0_24], %32 {strides = array<i32>} : memref<8x128xf32, #tpu.memory_space<vmem>>, vector<8x128xf32>,
    } else {
    }
    return
  }
  func.func @transform_0(%arg0: i32, %arg1: i32) -> (i32, i32, i32) {
    %c0_i32 = arith.constant 0 : i32
    %c0_i32_0 = arith.constant 0 : i32
    return %arg1, %arg0, %c0_i32 : i32, i32, i32
  }
  func.func @transform_1(%arg0: i32, %arg1: i32) -> (i32, i32) {
    %c0_i32 = arith.constant 0 : i32
    %c0_i32_0 = arith.constant 0 : i32
    %c0_i32_1 = arith.constant 0 : i32
    return %c0_i32, %c0_i32_0 : i32, i32
  }
  func.func @transform_2(%arg0: i32, %arg1: i32) -> (i32, i32) {
    %c0_i32 = arith.constant 0 : i32
    %c0_i32_0 = arith.constant 0 : i32
    return %arg0, %c0_i32 : i32, i32
  }
  func.func @transform_3(%arg0: i32, %arg1: i32) -> (i32, i32) {
    %c0_i32 = arith.constant 0 : i32
    %c0_i32_0 = arith.constant 0 : i32
    return %arg0, %c0_i32 : i32, i32
  }
  func.func @transform_4(%arg0: i32, %arg1: i32) -> (i32, i32, i32) {
    %c0_i32 = arith.constant 0 : i32
    %c0_i32_0 = arith.constant 0 : i32
    return %arg1, %arg0, %c0_i32 : i32, i32, i32
  }
  func.func @transform_5(%arg0: i32, %arg1: i32) -> (i32, i32) {
    %c0_i32 = arith.constant 0 : i32
    %c0_i32_0 = arith.constant 0 : i32
    return %arg0, %c0_i32 : i32, i32
  }
  func.func @transform_6(%arg0: i32, %arg1: i32) -> (i32, i32) {
    %c0_i32 = arith.constant 0 : i32
    %c0_i32_0 = arith.constant 0 : i32
    return %arg0, %c0_i32 : i32, i32
  }
}

</mosaic_0001>

<llo_original>
// kernel: lstm_sequence.1
$region0: #{lstm_sequence.1}
  #allocation0 [shape = 'u32[]', space=smem, size = 0x4, offset = 0x4, fixed_abs, tag = 'smem constant byte address 0x4 - core index']
  #allocation1 [shape = 'u32[144,128]{1,0:T(1,128)}', space=vmem, size = 0x12000, scoped, tag = 'internal scratch']
  #allocation2 [shape = 'f32[8,128]{1,0:T(8,128)}', space=vmem, size = 0x1000, scoped, tag = 'scratch operand']
  #allocation3 [shape = 'f32[8,128]{1,0:T(8,128)}', space=vmem, size = 0x1000, scoped, tag = 'scratch operand']
  %s0 = inlined_call_operand.vmem [shape: f32[1,8,512], index: 0, kind: input, shape index: {}]
  %s1 = inlined_call_operand.vmem [shape: f32[128,512], index: 1, kind: input, shape index: {}]
  %s2 = inlined_call_operand.vmem [shape: f32[8,128], index: 2, kind: input, shape index: {}, may-alias: {2,5}]
  %s3 = inlined_call_operand.vmem [shape: f32[8,128], index: 3, kind: input, shape index: {}, may-alias: {3,6}]
  %s4 = inlined_call_operand.vmem [shape: f32[1,8,128], index: 4, kind: output, shape index: {0}]
  %s5 = inlined_call_operand.vmem [shape: f32[8,128], index: 5, kind: output, shape index: {1}, may-alias: {2,5}]
  %s6 = inlined_call_operand.vmem [shape: f32[8,128], index: 6, kind: output, shape index: {2}, may-alias: {3,6}]
  %7 = xla_tuple %s4, %s5, %s6
  %s8 = sld [smem:[#allocation0]]
  $region50: #{lstm_sequence.1} parent=0
    _
  %s10 = ssub.s32 1, %s8
  %s11 = scalar_select 0, %s10, %s8
  // Predicated region
  $region2: #{lstm_sequence.1} parent=0 // pred_check
    _
  $region3: #{lstm_sequence.1} parent=0 // pred_check_branch
    %13 = sbr.rel (0) target = $region5
  $region4: #{lstm_sequence.1} parent=0 // pred_region
    _
  $region5: #{lstm_sequence.1} parent=0 // pred_fallthru
    _
  // Predicated region
  $region6: #{lstm_sequence.1} parent=0 // pred_check
    _
  $region7: #{lstm_sequence.1} parent=0 // pred_check_branch
    %15 = sbr.rel (0) target = $region9
  $region8: #{lstm_sequence.1} parent=0 // pred_region
    _
  $region9: #{lstm_sequence.1} parent=0 // pred_fallthru
    _
  // Predicated region
  $region10: #{lstm_sequence.1} parent=0 // pred_check
    _
  $region11: #{lstm_sequence.1} parent=0 // pred_check_branch
    %17 = sbr.rel (0) target = $region13
  $region12: #{lstm_sequence.1} parent=0 // pred_region
    _
  $region13: #{lstm_sequence.1} parent=0 // pred_fallthru
    _
  // Predicated region
  $region14: #{lstm_sequence.1} parent=0 // pred_check
    _
  $region15: #{lstm_sequence.1} parent=0 // pred_check_branch
    %19 = sbr.rel (0) target = $region17
  $region16: #{lstm_sequence.1} parent=0 // pred_region
    _
  $region17: #{lstm_sequence.1} parent=0 // pred_fallthru
    _
  %p20 = scmp.eq.s32.totalorder 0, 0
  // Predicated region
  $region18: #{lstm_sequence.1} parent=0 // pred_check
    %p21 = pneg %p20
  $region19: #{lstm_sequence.1} parent=0 // pred_check_branch
    %23 = sbr.rel (%p21) target = $region21
  $region20: #{lstm_sequence.1} parent=0 // pred_region
    %v24 = vld [vmem:[%s2] sm:$0xff]
    %25 = vst [vmem:[#allocation2] sm:$0xff] %v24
    %v26 = vld [vmem:[%s3] sm:$0xff]
    %27 = vst [vmem:[#allocation3] sm:$0xff] %v26
  $region21: #{lstm_sequence.1} parent=0 // pred_fallthru
    _
  %v28 = vld [vmem:[%s0] sm:$0xff]
  %v29 = vld [vmem:[%s0 + $0x8] sm:$0xff]
  %v30 = vld [vmem:[%s0 + $0x10] sm:$0xff]
  %v31 = vld [vmem:[%s0 + $0x18] sm:$0xff]
  %v32 = vld [vmem:[#allocation2] sm:$0xff]
  %v33 = vld [vmem:[%s1] sm:$0xff]
  %v34 = vld [vmem:[%s1 + $0x8] sm:$0xff]
  %v35 = vld [vmem:[%s1 + $0x10] sm:$0xff]
  %v36 = vld [vmem:[%s1 + $0x18] sm:$0xff]
  %v37 = vld [vmem:[%s1 + $0x20] sm:$0xff]
  %v38 = vld [vmem:[%s1 + $0x28] sm:$0xff]
  %v39 = vld [vmem:[%s1 + $0x30] sm:$0xff]
  %v40 = vld [vmem:[%s1 + $0x38] sm:$0xff]
  %v41 = vld [vmem:[%s1 + $0x40] sm:$0xff]
  %v42 = vld [vmem:[%s1 + $0x48] sm:$0xff]
  %v43 = vld [vmem:[%s1 + $0x50] sm:$0xff]
  %v44 = vld [vmem:[%s1 + $0x58] sm:$0xff]
  %v45 = vld [vmem:[%s1 + $0x60] sm:$0xff]
  %v46 = vld [vmem:[%s1 + $0x68] sm:$0xff]
  %v47 = vld [vmem:[%s1 + $0x70] sm:$0xff]
  %v48 = vld [vmem:[%s1 + $0x78] sm:$0xff]
  %v49 = vld [vmem:[%s1 + $0x80] sm:$0xff]
  %v50 = vld [vmem:[%s1 + $0x88] sm:$0xff]
  %v51 = vld [vmem:[%s1 + $0x90] sm:$0xff]
  %v52 = vld [vmem:[%s1 + $0x98] sm:$0xff]
  %v53 = vld [vmem:[%s1 + $0xa0] sm:$0xff]
  %v54 = vld [vmem:[%s1 + $0xa8] sm:$0xff]
  %v55 = vld [vmem:[%s1 + $0xb0] sm:$0xff]
  %v56 = vld [vmem:[%s1 + $0xb8] sm:$0xff]
  %v57 = vld [vmem:[%s1 + $0xc0] sm:$0xff]
  %v58 = vld [vmem:[%s1 + $0xc8] sm:$0xff]
  %v59 = vld [vmem:[%s1 + $0xd0] sm:$0xff]
  %v60 = vld [vmem:[%s1 + $0xd8] sm:$0xff]
  %v61 = vld [vmem:[%s1 + $0xe0] sm:$0xff]
  %v62 = vld [vmem:[%s1 + $0xe8] sm:$0xff]
  %v63 = vld [vmem:[%s1 + $0xf0] sm:$0xff]
  %v64 = vld [vmem:[%s1 + $0xf8] sm:$0xff]
  %v65 = vld [vmem:[%s1 + $0x100] sm:$0xff]
  %v66 = vld [vmem:[%s1 + $0x108] sm:$0xff]
  %v67 = vld [vmem:[%s1 + $0x110] sm:$0xff]
  %v68 = vld [vmem:[%s1 + $0x118] sm:$0xff]
  %v69 = vld [vmem:[%s1 + $0x120] sm:$0xff]
  %v70 = vld [vmem:[%s1 + $0x128] sm:$0xff]
  %v71 = vld [vmem:[%s1 + $0x130] sm:$0xff]
  %v72 = vld [vmem:[%s1 + $0x138] sm:$0xff]
  %v73 = vld [vmem:[%s1 + $0x140] sm:$0xff]
  %v74 = vld [vmem:[%s1 + $0x148] sm:$0xff]
  %v75 = vld [vmem:[%s1 + $0x150] sm:$0xff]
  %v76 = vld [vmem:[%s1 + $0x158] sm:$0xff]
  %v77 = vld [vmem:[%s1 + $0x160] sm:$0xff]
  %v78 = vld [vmem:[%s1 + $0x168] sm:$0xff]
  %v79 = vld [vmem:[%s1 + $0x170] sm:$0xff]
  %v80 = vld [vmem:[%s1 + $0x178] sm:$0xff]
  %v81 = vld [vmem:[%s1 + $0x180] sm:$0xff]
  %v82 = vld [vmem:[%s1 + $0x188] sm:$0xff]
  %v83 = vld [vmem:[%s1 + $0x190] sm:$0xff]
  %v84 = vld [vmem:[%s1 + $0x198] sm:$0xff]
  %v85 = vld [vmem:[%s1 + $0x1a0] sm:$0xff]
  %v86 = vld [vmem:[%s1 + $0x1a8] sm:$0xff]
  %v87 = vld [vmem:[%s1 + $0x1b0] sm:$0xff]
  %v88 = vld [vmem:[%s1 + $0x1b8] sm:$0xff]
  %v89 = vld [vmem:[%s1 + $0x1c0] sm:$0xff]
  %v90 = vld [vmem:[%s1 + $0x1c8] sm:$0xff]
  %v91 = vld [vmem:[%s1 + $0x1d0] sm:$0xff]
  %v92 = vld [vmem:[%s1 + $0x1d8] sm:$0xff]
  %v93 = vld [vmem:[%s1 + $0x1e0] sm:$0xff]
  %v94 = vld [vmem:[%s1 + $0x1e8] sm:$0xff]
  %v95 = vld [vmem:[%s1 + $0x1f0] sm:$0xff]
  %v96 = vld [vmem:[%s1 + $0x1f8] sm:$0xff]
  %97 = vmatprep.subr.mxu0 %v34
  %98 = vmatpush1.msra.mxu0 %v33
  %99 = vmatprep.subr.mxu0 %v38
  %100 = vmatpush1.msra.mxu0 %v37
  %101 = vmatprep.subr.mxu0 %v42
  %102 = vmatpush1.msra.mxu0 %v41
  %103 = vmatprep.subr.mxu0 %v46
  %104 = vmatpush1.msra.mxu0 %v45
  %105 = vmatprep.subr.mxu0 %v50
  %106 = vmatpush1.msra.mxu0 %v49
  %107 = vmatprep.subr.mxu0 %v54
  %108 = vmatpush1.msra.mxu0 %v53
  %109 = vmatprep.subr.mxu0 %v58
  %110 = vmatpush1.msra.mxu0 %v57
  %111 = vmatprep.subr.mxu0 %v62
  %112 = vmatpush1.msra.mxu0 %v61
  %113 = vmatprep.subr.mxu0 %v66
  %114 = vmatpush1.msra.mxu0 %v65
  %115 = vmatprep.subr.mxu0 %v70
  %116 = vmatpush1.msra.mxu0 %v69
  %117 = vmatprep.subr.mxu0 %v74
  %118 = vmatpush1.msra.mxu0 %v73
  %119 = vmatprep.subr.mxu0 %v78
  %120 = vmatpush1.msra.mxu0 %v77
  %121 = vmatprep.subr.mxu0 %v82
  %122 = vmatpush1.msra.mxu0 %v81
  %123 = vmatprep.subr.mxu0 %v86
  %124 = vmatpush1.msra.mxu0 %v85
  %125 = vmatprep.subr.mxu0 %v90
  %126 = vmatpush1.msra.mxu0 %v89
  %127 = vmatprep.subr.mxu0 %v94
  %128 = vmatpush1.msra.mxu0 %v93
  %129 = vmatprep.subr.mxu0 0.0
  %130 = vmatpush1.msra.mxu0 0.0
  %131 = vmatprep.subr.mxu0 0.0
  %132 = vmatpush1.msra.mxu0 0.0
  %133 = vmatprep.subr.mxu0 0.0
  %134 = vmatpush1.msra.mxu0 0.0
  %135 = vmatprep.subr.mxu0 0.0
  %136 = vmatpush1.msra.mxu0 0.0
  %137 = vmatprep.subr.mxu0 0.0
  %138 = vmatpush1.msra.mxu0 0.0
  %139 = vmatprep.subr.mxu0 0.0
  %140 = vmatpush1.msra.mxu0 0.0
  %141 = vmatprep.subr.mxu0 0.0
  %142 = vmatpush1.msra.mxu0 0.0
  %143 = vmatprep.subr.mxu0 0.0
  %144 = vmatpush1.msra.mxu0 0.0
  %145 = vmatprep.subr.mxu0 0.0
  %146 = vmatpush1.msra.mxu0 0.0
  %147 = vmatprep.subr.mxu0 0.0
  %148 = vmatpush1.msra.mxu0 0.0
  %149 = vmatprep.subr.mxu0 0.0
  %150 = vmatpush1.msra.mxu0 0.0
  %151 = vmatprep.subr.mxu0 0.0
  %152 = vmatpush1.msra.mxu0 0.0
  %153 = vmatprep.subr.mxu0 0.0
  %154 = vmatpush1.msra.mxu0 0.0
  %155 = vmatprep.subr.mxu0 0.0
  %156 = vmatpush1.msra.mxu0 0.0
  %157 = vmatprep.subr.mxu0 0.0
  %158 = vmatpush1.msra.mxu0 0.0
  %159 = vmatprep.subr.mxu0 0.0
  %160 = vmatpush1.msra.mxu0 0.0
  %161 = vmatprep.mubr.f32.mxu0 0.0
  %162 = vmatmul.mubr.f32.gmra.mrb[0].mxu0 %v32
  %v163 = vpop.f32.mrb[0].mxu0
  %v164 = vadd.f32 0.0, %v163
  %v165 = vpop.f32.mrb[0].mxu0
  %v166 = vadd.f32 0.0, %v165
  %167 = vdwg.mxu0
  %168 = vmatprep.subr.mxu0 %v36
  %169 = vmatpush1.msra.mxu0 %v35
  %170 = vmatprep.subr.mxu0 %v40
  %171 = vmatpush1.msra.mxu0 %v39
  %172 = vmatprep.subr.mxu0 %v44
  %173 = vmatpush1.msra.mxu0 %v43
  %174 = vmatprep.subr.mxu0 %v48
  %175 = vmatpush1.msra.mxu0 %v47
  %176 = vmatprep.subr.mxu0 %v52
  %177 = vmatpush1.msra.mxu0 %v51
  %178 = vmatprep.subr.mxu0 %v56
  %179 = vmatpush1.msra.mxu0 %v55
  %180 = vmatprep.subr.mxu0 %v60
  %181 = vmatpush1.msra.mxu0 %v59
  %182 = vmatprep.subr.mxu0 %v64
  %183 = vmatpush1.msra.mxu0 %v63
  %184 = vmatprep.subr.mxu0 %v68
  %185 = vmatpush1.msra.mxu0 %v67
  %186 = vmatprep.subr.mxu0 %v72
  %187 = vmatpush1.msra.mxu0 %v71
  %188 = vmatprep.subr.mxu0 %v76
  %189 = vmatpush1.msra.mxu0 %v75
  %190 = vmatprep.subr.mxu0 %v80
  %191 = vmatpush1.msra.mxu0 %v79
  %192 = vmatprep.subr.mxu0 %v84
  %193 = vmatpush1.msra.mxu0 %v83
  %194 = vmatprep.subr.mxu0 %v88
  %195 = vmatpush1.msra.mxu0 %v87
  %196 = vmatprep.subr.mxu0 %v92
  %197 = vmatpush1.msra.mxu0 %v91
  %198 = vmatprep.subr.mxu0 %v96
  %199 = vmatpush1.msra.mxu0 %v95
  %200 = vmatprep.subr.mxu0 0.0
  %201 = vmatpush1.msra.mxu0 0.0
  %202 = vmatprep.subr.mxu0 0.0
  %203 = vmatpush1.msra.mxu0 0.0
  %204 = vmatprep.subr.mxu0 0.0
  %205 = vmatpush1.msra.mxu0 0.0
  %206 = vmatprep.subr.mxu0 0.0
  %207 = vmatpush1.msra.mxu0 0.0
  %208 = vmatprep.subr.mxu0 0.0
  %209 = vmatpush1.msra.mxu0 0.0
  %210 = vmatprep.subr.mxu0 0.0
  %211 = vmatpush1.msra.mxu0 0.0
  %212 = vmatprep.subr.mxu0 0.0
  %213 = vmatpush1.msra.mxu0 0.0
  %214 = vmatprep.subr.mxu0 0.0
  %215 = vmatpush1.msra.mxu0 0.0
  %216 = vmatprep.subr.mxu0 0.0
  %217 = vmatpush1.msra.mxu0 0.0
  %218 = vmatprep.subr.mxu0 0.0
  %219 = vmatpush1.msra.mxu0 0.0
  %220 = vmatprep.subr.mxu0 0.0
  %221 = vmatpush1.msra.mxu0 0.0
  %222 = vmatprep.subr.mxu0 0.0
  %223 = vmatpush1.msra.mxu0 0.0
  %224 = vmatprep.subr.mxu0 0.0
  %225 = vmatpush1.msra.mxu0 0.0
  %226 = vmatprep.subr.mxu0 0.0
  %227 = vmatpush1.msra.mxu0 0.0
  %228 = vmatprep.subr.mxu0 0.0
  %229 = vmatpush1.msra.mxu0 0.0
  %230 = vmatprep.subr.mxu0 0.0
  %231 = vmatpush1.msra.mxu0 0.0
  %232 = vmatprep.mubr.f32.mxu0 0.0
  %233 = vmatmul.mubr.f32.gmra.mrb[0].mxu0 %v32
  %v234 = vpop.f32.mrb[0].mxu0
  %v235 = vadd.f32 0.0, %v234
  %v236 = vpop.f32.mrb[0].mxu0
  %v237 = vadd.f32 0.0, %v236
  %238 = vdwg.mxu0
  %v239 = vadd.f32 %v28, %v164
  %v240 = vadd.f32 %v29, %v166
  %v241 = vadd.f32 %v30, %v235
  %v242 = vadd.f32 %v31, %v237
  %v243 = vxor.u32 %v239, 2147483648
  %v244 = vmul.f32 %v243, 1.442695
  %v245 = vpow.pop %v244
  %v246 = vadd.f32 %v245, 1.0
  %v247 = vrcp.pop %v246
  %v248 = vmul.f32 1.0, %v247
  %v249 = vxor.u32 %v240, 2147483648
  %v250 = vmul.f32 %v249, 1.442695
  %v251 = vpow.pop %v250
  %v252 = vadd.f32 %v251, 1.0
  %v253 = vrcp.pop %v252
  %v254 = vmul.f32 1.0, %v253
  %v255 = vxor.u32 %v241, 2147483648
  %v256 = vmul.f32 %v255, 1.442695
  %v257 = vpow.pop %v256
  %v258 = vadd.f32 %v257, 1.0
  %v259 = vrcp.pop %v258
  %v260 = vmul.f32 1.0, %v259
  %v261 = vtanh.pop %v242
  %v262 = vld [vmem:[#allocation3] sm:$0xff]
  %v263 = vmul.f32 %v248, %v262
  %v264 = vmul.f32 %v254, %v261
  %v265 = vadd.f32 %v263, %v264
  %v266 = vtanh.pop %v265
  %v267 = vmul.f32 %v260, %v266
  %268 = vst [vmem:[#allocation3] sm:$0xff] %v265
  %269 = vst [vmem:[#allocation2] sm:$0xff] %v267
  %270 = vst [vmem:[%s4] sm:$0xff] %v267
  // Predicated region
  $region22: #{lstm_sequence.1} parent=0 // pred_check
    %p271 = pneg %p20
  $region23: #{lstm_sequence.1} parent=0 // pred_check_branch
    %273 = sbr.rel (%p271) target = $region25
  $region24: #{lstm_sequence.1} parent=0 // pred_region
    %274 = vst [vmem:[%s5] sm:$0xff] %v267
    %275 = vst [vmem:[%s6] sm:$0xff] %v265
  $region25: #{lstm_sequence.1} parent=0 // pred_fallthru
    _
  // Predicated region
  $region26: #{lstm_sequence.1} parent=0 // pred_check
    _
  $region27: #{lstm_sequence.1} parent=0 // pred_check_branch
    %277 = sbr.rel (0) target = $region29
  $region28: #{lstm_sequence.1} parent=0 // pred_region
    _
  $region29: #{lstm_sequence.1} parent=0 // pred_fallthru
    _
  // Predicated region
  $region30: #{lstm_sequence.1} parent=0 // pred_check
    _
  $region31: #{lstm_sequence.1} parent=0 // pred_check_branch
    %279 = sbr.rel (0) target = $region33
  $region32: #{lstm_sequence.1} parent=0 // pred_region
    _
  $region33: #{lstm_sequence.1} parent=0 // pred_fallthru
    _
  // Predicated region
  $region34: #{lstm_sequence.1} parent=0 // pred_check
    _
  $region35: #{lstm_sequence.1} parent=0 // pred_check_branch
    %281 = sbr.rel (0) target = $region37
  $region36: #{lstm_sequence.1} parent=0 // pred_region
    _
  $region37: #{lstm_sequence.1} parent=0 // pred_fallthru
    _
  // Predicated region
  $region38: #{lstm_sequence.1} parent=0 // pred_check
    _
  $region39: #{lstm_sequence.1} parent=0 // pred_check_branch
    %283 = sbr.rel (0) target = $region41
  $region40: #{lstm_sequence.1} parent=0 // pred_region
    _
  $region41: #{lstm_sequence.1} parent=0 // pred_fallthru
    _
  // Predicated region
  $region42: #{lstm_sequence.1} parent=0 // pred_check
    _
  $region43: #{lstm_sequence.1} parent=0 // pred_check_branch
    %285 = sbr.rel (0) target = $region45
  $region44: #{lstm_sequence.1} parent=0 // pred_region
    _
  $region45: #{lstm_sequence.1} parent=0 // pred_fallthru
    _
  // Predicated region
  $region46: #{lstm_sequence.1} parent=0 // pred_check
    _
  $region47: #{lstm_sequence.1} parent=0 // pred_check_branch
    %287 = sbr.rel (0) target = $region49
  $region48: #{lstm_sequence.1} parent=0 // pred_region
    _
  $region49: #{lstm_sequence.1} parent=0 // pred_fallthru
    _

</llo_original>
